<compile_context>
chip_gen: v7x
topology: tpu7x:2x2x1
jax: 0.10.0
libtpu: 0.0.40
codegen_flags: <defaults>
</compile_context>

<pallas_src>
import functools

import jax
import jax.numpy as jnp
from jax.experimental import pallas as pl
from jax.experimental.pallas import tpu as pltpu


def _policy_kernel(xT_ref, w1_ref, b1_ref, w2_ref, b2_ref, o_ref, *,
                   action_bound):
    xT = xT_ref[...]                    # (S,  TB)   streamed per tile
    w1 = w1_ref[...]                    # (H,  S)    resident
    w2 = w2_ref[...]                    # (A8, H)    resident
    b1 = b1_ref[...]                    # (H,  1)    f32, lane-broadcast
    b2 = b2_ref[...]                    # (A8, 1)    f32, lane-broadcast

    # fc1 + ReLU: h^T = relu(W1 @ x^T + b1), f32 MXU accumulation.
    hT = jnp.dot(w1, xT, preferred_element_type=jnp.float32) + b1
    hT = jnp.maximum(hT, 0.0)

    # fc2 + Tanh + action_bound: out^T = tanh(W2 @ h^T + b2) * bound.
    aT = jnp.dot(w2, hT.astype(w2.dtype),
                 preferred_element_type=jnp.float32) + b2
    o_ref[...] = (jnp.tanh(aT) * action_bound).astype(o_ref.dtype)


def prepare_params(w1, b1, w2, b2, *, dtype=jnp.bfloat16):
    """One-time param prep (hoisted out of the forward path).

    Inputs use PyTorch nn.Linear layout: w1 (H, S), b1 (H,), w2 (A, H), b2 (A,).
    Returns (w1t, b1c, w2p, b2p): weights cast to `dtype`, W2/b2 sublane-padded
    A -> A8 (multiple of 8), biases as f32 column vectors.
    """
    H, _ = w1.shape
    A = w2.shape[0]
    A8 = max(8, pl.cdiv(A, 8) * 8)
    w2p = jnp.zeros((A8, w2.shape[1]), w2.dtype).at[:A, :].set(w2)
    b2p = jnp.zeros((A8, 1), jnp.float32).at[:A, 0].set(b2.astype(jnp.float32))
    return (w1.astype(dtype),
            b1.reshape(H, 1).astype(jnp.float32),
            w2p.astype(dtype),
            b2p)


def _select_tile(B, block_b):
    """Batch tile: multiple of 128; >=2 grid steps when the batch allows it."""
    if B >= 2 * block_b:
        return block_b
    if B > 128:
        return pl.cdiv(B, 256) * 128     # two tiles, each a multiple of 128
    return 128


@functools.partial(jax.jit,
                   static_argnames=("action_dim", "action_bound", "block_b"))
def policy_net_forward(x, params, *, action_dim, action_bound, block_b=1024):
    """Fused PolicyNet forward.  x: (B, S) -> (B, action_dim)."""
    w1t, b1c, w2p, b2p = params
    B, S = x.shape
    H = w1t.shape[0]
    A8 = w2p.shape[0]

    TB = _select_tile(B, block_b)
    B_pad = pl.cdiv(B, TB) * TB

    # Fused cast + transpose + pad of x (single jitted pass over a tiny array).
    xT = jnp.pad(x.astype(w1t.dtype).T, ((0, 0), (0, B_pad - B)))

    kernel = functools.partial(_policy_kernel, action_bound=float(action_bound))

    outT = pl.pallas_call(
        kernel,
        out_shape=jax.ShapeDtypeStruct((A8, B_pad), jnp.float32),
        grid_spec=pltpu.PrefetchScalarGridSpec(
            num_scalar_prefetch=0,
            grid=(B_pad // TB,),
            in_specs=[
                pl.BlockSpec((S, TB), lambda i: (0, i)),    # x^T: streamed
                pl.BlockSpec((H, S), lambda i: (0, 0)),     # W1: resident
                pl.BlockSpec((H, 1), lambda i: (0, 0)),     # b1: resident
                pl.BlockSpec((A8, H), lambda i: (0, 0)),    # W2 (padded): resident
                pl.BlockSpec((A8, 1), lambda i: (0, 0)),    # b2 (padded): resident
            ],
            out_specs=pl.BlockSpec((A8, TB), lambda i: (0, i)),
        ),
        # Batch tiles are independent -> shard the grid across v7x's 2 TCs.
        # VMEM is a few hundred KiB even at TB=1024; no vmem_limit_bytes needed.
        compiler_params=pltpu.CompilerParams(
            dimension_semantics=("parallel",),
        ),
    )(xT, w1t, b1c, w2p, b2p)

    # Drop sublane/lane padding and return batch-major (B, A).
    return outT[:action_dim, :B].T


def init_params(key, state_dim, hidden_dim, action_dim):
    """PyTorch nn.Linear default init: U(-1/sqrt(fan_in), +1/sqrt(fan_in))."""
    k1, k2, k3, k4 = jax.random.split(key, 4)
    lim1 = 1.0 / jnp.sqrt(jnp.float32(state_dim))
    lim2 = 1.0 / jnp.sqrt(jnp.float32(hidden_dim))
    # PyTorch layout: weight (out, in), bias (out,)
    w1 = jax.random.uniform(k1, (hidden_dim, state_dim), jnp.float32, -lim1, lim1)
    b1 = jax.random.uniform(k2, (hidden_dim,), jnp.float32, -lim1, lim1)
    w2 = jax.random.uniform(k3, (action_dim, hidden_dim), jnp.float32, -lim2, lim2)
    b2 = jax.random.uniform(k4, (action_dim,), jnp.float32, -lim2, lim2)
    return w1, b1, w2, b2


def reference_forward(x, w1, b1, w2, b2, action_bound):
    h = jnp.maximum(x @ w1.T + b1, 0.0)
    return jnp.tanh(h @ w2.T + b2) * action_bound


if __name__ == "__main__":
    state_dim, hidden_dim, action_dim = 4, 32, 2
    action_bound = 2.0

    key = jax.random.PRNGKey(0)
    kx, kx2, kp = jax.random.split(key, 3)
    w1, b1, w2, b2 = init_params(kp, state_dim, hidden_dim, action_dim)

    # 1) Toy batch (module-consistent small shapes), f32 params, tight tolerance.
    params_f32 = prepare_params(w1, b1, w2, b2, dtype=jnp.float32)
    x_small = jax.random.normal(kx, (2, state_dim), jnp.float32)
    out = jax.block_until_ready(
        policy_net_forward(x_small, params_f32,
                           action_dim=action_dim, action_bound=action_bound))
    ref = reference_forward(x_small, w1, b1, w2, b2, action_bound)
    assert out.shape == (2, action_dim)
    assert jnp.allclose(out, ref, atol=1e-5, rtol=1e-5)

    # 2) Realistic DDPG batch exercising the batch grid (2 tiles of 256),
    #    default bf16 fast path (f32 accumulation), relaxed tolerance.
    params_bf16 = prepare_params(w1, b1, w2, b2, dtype=jnp.bfloat16)
    x_big = jax.random.normal(kx2, (512, state_dim), jnp.float32)
    out_big = jax.block_until_ready(
        policy_net_forward(x_big, params_bf16,
                           action_dim=action_dim, action_bound=action_bound))
    ref_big = reference_forward(x_big, w1, b1, w2, b2, action_bound)
    assert out_big.shape == (512, action_dim)
    assert jnp.allclose(out_big, ref_big, atol=2e-2, rtol=2e-2)
    assert jnp.all(jnp.isfinite(out_big))

    print("KERNEL_OK")
</pallas_src>

<mosaic_0001>
module attributes {stable_mosaic.version = 11 : i64} {
  func.func @_policy_kernel(%arg0: i32, %arg1: memref<4x128xf32, #tpu.memory_space<vmem>>, %arg2: memref<32x4xf32, #tpu.memory_space<vmem>>, %arg3: memref<32x1xf32, #tpu.memory_space<vmem>>, %arg4: memref<8x32xf32, #tpu.memory_space<vmem>>, %arg5: memref<8x1xf32, #tpu.memory_space<vmem>>, %arg6: memref<8x128xf32, #tpu.memory_space<vmem>>) attributes {dimension_semantics = [#tpu.dimension_semantics<parallel>], iteration_bounds = array<i64: 1>, scalar_prefetch = 0 : i64, scratch_operands = 0 : i64, tpu.core_type = #tpu.core_type<tc>, window_params = [{transform_indices = @transform_0, window_bounds = array<i64: 4, 128>}, {pipeline_mode = #tpu.pipeline_mode<synchronous>, transform_indices = @transform_1, window_bounds = array<i64: 32, 4>}, {pipeline_mode = #tpu.pipeline_mode<synchronous>, transform_indices = @transform_2, window_bounds = array<i64: 32, 1>}, {pipeline_mode = #tpu.pipeline_mode<synchronous>, transform_indices = @transform_3, window_bounds = array<i64: 8, 32>}, {pipeline_mode = #tpu.pipeline_mode<synchronous>, transform_indices = @transform_4, window_bounds = array<i64: 8, 1>}, {transform_indices = @transform_5, window_bounds = array<i64: 8, 128>}]} {
    %c0 = arith.constant 0 : index
    %c0_0 = arith.constant 0 : index
    %0 = vector.load %arg1[%c0, %c0_0] : memref<4x128xf32, #tpu.memory_space<vmem>>, vector<4x128xf32>
    %c0_1 = arith.constant 0 : index
    %c0_2 = arith.constant 0 : index
    %1 = vector.load %arg2[%c0_1, %c0_2] : memref<32x4xf32, #tpu.memory_space<vmem>>, vector<32x4xf32>
    %c0_3 = arith.constant 0 : index
    %c0_4 = arith.constant 0 : index
    %2 = vector.load %arg4[%c0_3, %c0_4] : memref<8x32xf32, #tpu.memory_space<vmem>>, vector<8x32xf32>
    %c0_5 = arith.constant 0 : index
    %c0_6 = arith.constant 0 : index
    %3 = vector.load %arg3[%c0_5, %c0_6] : memref<32x1xf32, #tpu.memory_space<vmem>>, vector<32x1xf32>
    %c0_7 = arith.constant 0 : index
    %c0_8 = arith.constant 0 : index
    %4 = vector.load %arg5[%c0_7, %c0_8] : memref<8x1xf32, #tpu.memory_space<vmem>>, vector<8x1xf32>
    %cst = arith.constant dense<0.000000e+00> : vector<32x128xf32>
    %5 = tpu.matmul %1, %0, %cst {dimension_numbers = #tpu.dot_dimension_numbers<[1], [0], [0], [1], [0, 0, 1, 1], [], []>} : vector<32x4xf32>, vector<4x128xf32>, vector<32x128xf32> -> vector<32x128xf32>
    %6 = vector.broadcast %3 : vector<32x1xf32> to vector<32x128xf32>
    %7 = arith.addf %5, %6 : vector<32x128xf32>
    %cst_9 = arith.constant 0.000000e+00 : f32
    %8 = vector.broadcast %cst_9 : f32 to vector<32x128xf32>
    %9 = arith.maximumf %7, %8 : vector<32x128xf32>
    %cst_10 = arith.constant dense<0.000000e+00> : vector<8x128xf32>
    %10 = tpu.matmul %2, %9, %cst_10 {dimension_numbers = #tpu.dot_dimension_numbers<[1], [0], [0], [1], [0, 0, 1, 1], [], []>} : vector<8x32xf32>, vector<32x128xf32>, vector<8x128xf32> -> vector<8x128xf32>
    %11 = vector.broadcast %4 : vector<8x1xf32> to vector<8x128xf32>
    %12 = arith.addf %10, %11 : vector<8x128xf32>
    %13 = math.tanh %12 : vector<8x128xf32>
    %cst_11 = arith.constant 2.000000e+00 : f32
    %14 = vector.broadcast %cst_11 : f32 to vector<8x128xf32>
    %15 = arith.mulf %13, %14 : vector<8x128xf32>
    %c0_12 = arith.constant 0 : index
    %c0_13 = arith.constant 0 : index
    %16 = vector.load %arg6[%c0_12, %c0_13] : memref<8x128xf32, #tpu.memory_space<vmem>>, vector<8x128xf32>
    tpu.vector_store %arg6[%c0_12, %c0_13], %15 {strides = array<i32>} : memref<8x128xf32, #tpu.memory_space<vmem>>, vector<8x128xf32>,
    return
  }
  func.func @transform_0(%arg0: i32) -> (i32, i32) {
    %c0_i32 = arith.constant 0 : i32
    %c0_i32_0 = arith.constant 0 : i32
    return %c0_i32, %arg0 : i32, i32
  }
  func.func @transform_1(%arg0: i32) -> (i32, i32) {
    %c0_i32 = arith.constant 0 : i32
    %c0_i32_0 = arith.constant 0 : i32
    %c0_i32_1 = arith.constant 0 : i32
    return %c0_i32, %c0_i32_0 : i32, i32
  }
  func.func @transform_2(%arg0: i32) -> (i32, i32) {
    %c0_i32 = arith.constant 0 : i32
    %c0_i32_0 = arith.constant 0 : i32
    %c0_i32_1 = arith.constant 0 : i32
    return %c0_i32, %c0_i32_0 : i32, i32
  }
  func.func @transform_3(%arg0: i32) -> (i32, i32) {
    %c0_i32 = arith.constant 0 : i32
    %c0_i32_0 = arith.constant 0 : i32
    %c0_i32_1 = arith.constant 0 : i32
    return %c0_i32, %c0_i32_0 : i32, i32
  }
  func.func @transform_4(%arg0: i32) -> (i32, i32) {
    %c0_i32 = arith.constant 0 : i32
    %c0_i32_0 = arith.constant 0 : i32
    %c0_i32_1 = arith.constant 0 : i32
    return %c0_i32, %c0_i32_0 : i32, i32
  }
  func.func @transform_5(%arg0: i32) -> (i32, i32) {
    %c0_i32 = arith.constant 0 : i32
    %c0_i32_0 = arith.constant 0 : i32
    return %c0_i32, %arg0 : i32, i32
  }
}

</mosaic_0001>

<llo_original>
// kernel: policy_net_forward.1
$region0: #{policy_net_forward.1}
  #allocation0 [shape = 'u32[]', space=smem, size = 0x4, offset = 0x4, fixed_abs, tag = 'smem constant byte address 0x4 - core index']
  #allocation1 [shape = 'u32[144,128]{1,0:T(1,128)}', space=vmem, size = 0x12000, scoped, tag = 'internal scratch']
  %s0 = inlined_call_operand.vmem [shape: f32[4,128], index: 0, kind: input, shape index: {}]
  %s1 = inlined_call_operand.vmem [shape: f32[32,4], index: 1, kind: input, shape index: {}]
  %s2 = inlined_call_operand.vmem [shape: f32[32,1], index: 2, kind: input, shape index: {}]
  %s3 = inlined_call_operand.vmem [shape: f32[8,32], index: 3, kind: input, shape index: {}]
  %s4 = inlined_call_operand.vmem [shape: f32[8,1], index: 4, kind: input, shape index: {}]
  %s5 = inlined_call_operand.vmem [shape: f32[8,128], index: 5, kind: output, shape index: {}]
  %s6 = sld [smem:[#allocation0]]
  $region30: #{policy_net_forward.1} parent=0
    _
  %s8 = ssub.s32 1, %s6
  %s9 = scalar_select 0, %s8, %s6
  // Predicated region
  $region2: #{policy_net_forward.1} parent=0 // pred_check
    _
  $region3: #{policy_net_forward.1} parent=0 // pred_check_branch
    %11 = sbr.rel (0) target = $region5
  $region4: #{policy_net_forward.1} parent=0 // pred_region
    _
  $region5: #{policy_net_forward.1} parent=0 // pred_fallthru
    _
  // Predicated region
  $region6: #{policy_net_forward.1} parent=0 // pred_check
    _
  $region7: #{policy_net_forward.1} parent=0 // pred_check_branch
    %13 = sbr.rel (0) target = $region9
  $region8: #{policy_net_forward.1} parent=0 // pred_region
    _
  $region9: #{policy_net_forward.1} parent=0 // pred_fallthru
    _
  // Predicated region
  $region10: #{policy_net_forward.1} parent=0 // pred_check
    _
  $region11: #{policy_net_forward.1} parent=0 // pred_check_branch
    %15 = sbr.rel (0) target = $region13
  $region12: #{policy_net_forward.1} parent=0 // pred_region
    _
  $region13: #{policy_net_forward.1} parent=0 // pred_fallthru
    _
  // Predicated region
  $region14: #{policy_net_forward.1} parent=0 // pred_check
    _
  $region15: #{policy_net_forward.1} parent=0 // pred_check_branch
    %17 = sbr.rel (0) target = $region17
  $region16: #{policy_net_forward.1} parent=0 // pred_region
    _
  $region17: #{policy_net_forward.1} parent=0 // pred_fallthru
    _
  // Predicated region
  $region18: #{policy_net_forward.1} parent=0 // pred_check
    _
  $region19: #{policy_net_forward.1} parent=0 // pred_check_branch
    %19 = sbr.rel (0) target = $region21
  $region20: #{policy_net_forward.1} parent=0 // pred_region
    _
  $region21: #{policy_net_forward.1} parent=0 // pred_fallthru
    _
  %v20 = vld [vmem:[%s0] sm:$0xf]
  %v21 = vld [vmem:[%s1] sm:$0xff]
  %v22 = vld [vmem:[%s1 + $0x8] sm:$0xff]
  %v23 = vld [vmem:[%s1 + $0x10] sm:$0xff]
  %v24 = vld [vmem:[%s1 + $0x18] sm:$0xff]
  %v25 = vld [vmem:[%s3] sm:$0xff]
  %v26 = vld [vmem:[%s2] sm:$0xff]
  %v27 = vld [vmem:[%s2 + $0x8] sm:$0xff]
  %v28 = vld [vmem:[%s2 + $0x10] sm:$0xff]
  %v29 = vld [vmem:[%s2 + $0x18] sm:$0xff]
  %v30 = vld [vmem:[%s4] sm:$0xff]
  %32 = vset.pattern.permute.xlu0 0
  %33 = vperm.xlu0 %32, %v26
  %v34 = vpop.permute.xlu0 %33
  %37 = vset.pattern.permute.xlu0 0
  %38 = vperm.xlu0 %37, %v27
  %v39 = vpop.permute.xlu0 %38
  %42 = vset.pattern.permute.xlu0 0
  %43 = vperm.xlu0 %42, %v28
  %v44 = vpop.permute.xlu0 %43
  %47 = vset.pattern.permute.xlu0 0
  %48 = vperm.xlu0 %47, %v29
  %v49 = vpop.permute.xlu0 %48
  %vm51 = vcmask 31744
  %v53 = vsel %vm51, %v21, 0
  %v56 = vsel %vm51, %v22, 0
  %v59 = vsel %vm51, %v23, 0
  %v62 = vsel %vm51, %v24, 0
  %vm64 = vcmask 1043456
  %v66 = vsel %vm64, %v20, 0
  %68 = vmatprep.subr.mxu0 0.0
  %69 = vmatpush1.msra.mxu0 %v66
  %70 = vmatprep.subr.mxu0 0.0
  %71 = vmatpush1.msra.mxu0 0.0
  %72 = vmatprep.subr.mxu0 0.0
  %73 = vmatpush1.msra.mxu0 0.0
  %74 = vmatprep.subr.mxu0 0.0
  %75 = vmatpush1.msra.mxu0 0.0
  %76 = vmatprep.subr.mxu0 0.0
  %77 = vmatpush1.msra.mxu0 0.0
  %78 = vmatprep.subr.mxu0 0.0
  %79 = vmatpush1.msra.mxu0 0.0
  %80 = vmatprep.subr.mxu0 0.0
  %81 = vmatpush1.msra.mxu0 0.0
  %82 = vmatprep.subr.mxu0 0.0
  %83 = vmatpush1.msra.mxu0 0.0
  %84 = vmatprep.subr.mxu0 0.0
  %85 = vmatpush1.msra.mxu0 0.0
  %86 = vmatprep.subr.mxu0 0.0
  %87 = vmatpush1.msra.mxu0 0.0
  %88 = vmatprep.subr.mxu0 0.0
  %89 = vmatpush1.msra.mxu0 0.0
  %90 = vmatprep.subr.mxu0 0.0
  %91 = vmatpush1.msra.mxu0 0.0
  %92 = vmatprep.subr.mxu0 0.0
  %93 = vmatpush1.msra.mxu0 0.0
  %94 = vmatprep.subr.mxu0 0.0
  %95 = vmatpush1.msra.mxu0 0.0
  %96 = vmatprep.subr.mxu0 0.0
  %97 = vmatpush1.msra.mxu0 0.0
  %98 = vmatprep.subr.mxu0 0.0
  %99 = vmatpush1.msra.mxu0 0.0
  %100 = vmatprep.subr.mxu0 0.0
  %101 = vmatpush1.msra.mxu0 0.0
  %102 = vmatprep.subr.mxu0 0.0
  %103 = vmatpush1.msra.mxu0 0.0
  %104 = vmatprep.subr.mxu0 0.0
  %105 = vmatpush1.msra.mxu0 0.0
  %106 = vmatprep.subr.mxu0 0.0
  %107 = vmatpush1.msra.mxu0 0.0
  %108 = vmatprep.subr.mxu0 0.0
  %109 = vmatpush1.msra.mxu0 0.0
  %110 = vmatprep.subr.mxu0 0.0
  %111 = vmatpush1.msra.mxu0 0.0
  %112 = vmatprep.subr.mxu0 0.0
  %113 = vmatpush1.msra.mxu0 0.0
  %114 = vmatprep.subr.mxu0 0.0
  %115 = vmatpush1.msra.mxu0 0.0
  %116 = vmatprep.subr.mxu0 0.0
  %117 = vmatpush1.msra.mxu0 0.0
  %118 = vmatprep.subr.mxu0 0.0
  %119 = vmatpush1.msra.mxu0 0.0
  %120 = vmatprep.subr.mxu0 0.0
  %121 = vmatpush1.msra.mxu0 0.0
  %122 = vmatprep.subr.mxu0 0.0
  %123 = vmatpush1.msra.mxu0 0.0
  %124 = vmatprep.subr.mxu0 0.0
  %125 = vmatpush1.msra.mxu0 0.0
  %126 = vmatprep.subr.mxu0 0.0
  %127 = vmatpush1.msra.mxu0 0.0
  %128 = vmatprep.subr.mxu0 0.0
  %129 = vmatpush1.msra.mxu0 0.0
  %130 = vmatprep.subr.mxu0 0.0
  %131 = vmatpush1.msra.mxu0 0.0
  %132 = vmatprep.mubr.f32.mxu0 0.0
  %133 = vmatmul.mubr.f32.gmra.mrb[0].mxu0 %v53
  %v134 = vpop.f32.mrb[0].mxu0
  %v135 = vadd.f32 %v34, %v134
  %v136 = vpop.f32.mrb[0].mxu0
  %137 = vmatprep.mubr.f32.mxu0 0.0
  %138 = vmatmul.mubr.f32.gmra.mrb[0].mxu0 %v56
  %v139 = vpop.f32.mrb[0].mxu0
  %v140 = vadd.f32 %v39, %v139
  %v141 = vpop.f32.mrb[0].mxu0
  %142 = vmatprep.mubr.f32.mxu0 0.0
  %143 = vmatmul.mubr.f32.gmra.mrb[0].mxu0 %v59
  %v144 = vpop.f32.mrb[0].mxu0
  %v145 = vadd.f32 %v44, %v144
  %v146 = vpop.f32.mrb[0].mxu0
  %147 = vmatprep.mubr.f32.mxu0 0.0
  %148 = vmatmul.mubr.f32.gmra.mrb[0].mxu0 %v62
  %v149 = vpop.f32.mrb[0].mxu0
  %v150 = vadd.f32 %v49, %v149
  %v151 = vpop.f32.mrb[0].mxu0
  %152 = vdwg.mxu0
  %v153 = vmax.f32 %v135, 0.0
  %v154 = vmax.f32 %v140, 0.0
  %v155 = vmax.f32 %v145, 0.0
  %v156 = vmax.f32 %v150, 0.0
  %158 = vset.pattern.permute.xlu0 0
  %159 = vperm.xlu0 %158, %v30
  %v160 = vpop.permute.xlu0 %159
  %vm162 = vcmask 261120
  %v164 = vsel %vm162, %v25, 0
  %166 = vmatprep.subr.mxu0 0.0
  %167 = vmatpush1.msra.mxu0 %v153
  %168 = vmatprep.subr.mxu0 0.0
  %169 = vmatpush1.msra.mxu0 %v154
  %170 = vmatprep.subr.mxu0 0.0
  %171 = vmatpush1.msra.mxu0 %v155
  %172 = vmatprep.subr.mxu0 0.0
  %173 = vmatpush1.msra.mxu0 %v156
  %174 = vmatprep.subr.mxu0 0.0
  %175 = vmatpush1.msra.mxu0 0.0
  %176 = vmatprep.subr.mxu0 0.0
  %177 = vmatpush1.msra.mxu0 0.0
  %178 = vmatprep.subr.mxu0 0.0
  %179 = vmatpush1.msra.mxu0 0.0
  %180 = vmatprep.subr.mxu0 0.0
  %181 = vmatpush1.msra.mxu0 0.0
  %182 = vmatprep.subr.mxu0 0.0
  %183 = vmatpush1.msra.mxu0 0.0
  %184 = vmatprep.subr.mxu0 0.0
  %185 = vmatpush1.msra.mxu0 0.0
  %186 = vmatprep.subr.mxu0 0.0
  %187 = vmatpush1.msra.mxu0 0.0
  %188 = vmatprep.subr.mxu0 0.0
  %189 = vmatpush1.msra.mxu0 0.0
  %190 = vmatprep.subr.mxu0 0.0
  %191 = vmatpush1.msra.mxu0 0.0
  %192 = vmatprep.subr.mxu0 0.0
  %193 = vmatpush1.msra.mxu0 0.0
  %194 = vmatprep.subr.mxu0 0.0
  %195 = vmatpush1.msra.mxu0 0.0
  %196 = vmatprep.subr.mxu0 0.0
  %197 = vmatpush1.msra.mxu0 0.0
  %198 = vmatprep.subr.mxu0 0.0
  %199 = vmatpush1.msra.mxu0 0.0
  %200 = vmatprep.subr.mxu0 0.0
  %201 = vmatpush1.msra.mxu0 0.0
  %202 = vmatprep.subr.mxu0 0.0
  %203 = vmatpush1.msra.mxu0 0.0
  %204 = vmatprep.subr.mxu0 0.0
  %205 = vmatpush1.msra.mxu0 0.0
  %206 = vmatprep.subr.mxu0 0.0
  %207 = vmatpush1.msra.mxu0 0.0
  %208 = vmatprep.subr.mxu0 0.0
  %209 = vmatpush1.msra.mxu0 0.0
  %210 = vmatprep.subr.mxu0 0.0
  %211 = vmatpush1.msra.mxu0 0.0
  %212 = vmatprep.subr.mxu0 0.0
  %213 = vmatpush1.msra.mxu0 0.0
  %214 = vmatprep.subr.mxu0 0.0
  %215 = vmatpush1.msra.mxu0 0.0
  %216 = vmatprep.subr.mxu0 0.0
  %217 = vmatpush1.msra.mxu0 0.0
  %218 = vmatprep.subr.mxu0 0.0
  %219 = vmatpush1.msra.mxu0 0.0
  %220 = vmatprep.subr.mxu0 0.0
  %221 = vmatpush1.msra.mxu0 0.0
  %222 = vmatprep.subr.mxu0 0.0
  %223 = vmatpush1.msra.mxu0 0.0
  %224 = vmatprep.subr.mxu0 0.0
  %225 = vmatpush1.msra.mxu0 0.0
  %226 = vmatprep.subr.mxu0 0.0
  %227 = vmatpush1.msra.mxu0 0.0
  %228 = vmatprep.subr.mxu0 0.0
  %229 = vmatpush1.msra.mxu0 0.0
  %230 = vmatprep.mubr.f32.mxu0 0.0
  %231 = vmatmul.mubr.f32.gmra.mrb[0].mxu0 %v164
  %v232 = vpop.f32.mrb[0].mxu0
  %v233 = vadd.f32 %v160, %v232
  %v234 = vpop.f32.mrb[0].mxu0
  %235 = vdwg.mxu0
  %v236 = vtanh.pop %v233
  %v237 = vmul.f32 %v236, 2.0
  %238 = vst [vmem:[%s5] sm:$0xff] %v237
  // Predicated region
  $region22: #{policy_net_forward.1} parent=0 // pred_check
    _
  $region23: #{policy_net_forward.1} parent=0 // pred_check_branch
    %240 = sbr.rel (0) target = $region25
  $region24: #{policy_net_forward.1} parent=0 // pred_region
    _
  $region25: #{policy_net_forward.1} parent=0 // pred_fallthru
    _
  // Predicated region
  $region26: #{policy_net_forward.1} parent=0 // pred_check
    _
  $region27: #{policy_net_forward.1} parent=0 // pred_check_branch
    %242 = sbr.rel (0) target = $region29
  $region28: #{policy_net_forward.1} parent=0 // pred_region
    _
  $region29: #{policy_net_forward.1} parent=0 // pred_fallthru
    _

</llo_original>
